<compile_context>
chip_gen: v7x
topology: tpu7x:2x2x1
jax: 0.10.0
libtpu: 0.0.40
codegen_flags: <defaults>
</compile_context>

<pallas_src>
import jax
import jax.numpy as jnp
from jax.experimental import pallas as pl
from jax.experimental.pallas import tpu as pltpu

_LANES = 128
_SUBLANES = 8

# Per-operand VMEM tile budget: 4 MiB x 3 operands x 2 buffers = 24 MiB.
_DEFAULT_MAX_TILE_BYTES = 4 * 1024 * 1024
# Below this, a single full-array block (no grid); above, a pipelined grid
# overlaps DMA-in / VPU multiply / DMA-out.
_DEFAULT_SINGLE_BLOCK_BYTES = 512 * 1024
# Aim for >= this many grid steps so both v7x TensorCores get work.
_MIN_GRID_STEPS = 4
# Raised scoped-VMEM limit (safe on all gens; v7x physical VMEM is 64 MiB).
_VMEM_LIMIT_BYTES = 48 * 1024 * 1024

_SMEM_SPEC = pl.BlockSpec(memory_space=pltpu.MemorySpace.SMEM)
_VMEM_SPEC = pl.BlockSpec(memory_space=pltpu.MemorySpace.VMEM)


# ----------------------------- kernels --------------------------------------


def _mul_kernel(x_ref, y_ref, o_ref):
    # dtype promotion happens here (operands arrive in native dtype).
    o_ref[...] = (x_ref[...] * y_ref[...]).astype(o_ref.dtype)


def _mul_vec_kernel(x_ref, v_ref, o_ref):
    # v_ref is a (1, lane) row kept resident in VMEM; VPU broadcasts it over
    # the row tile (no broadcast_to materialization in HBM).
    o_ref[...] = (x_ref[...] * v_ref[...]).astype(o_ref.dtype)


def _mul_scalar_kernel(s_ref, x_ref, o_ref):
    # s_ref is a (1,)-shaped 32-bit SMEM scalar; broadcast-multiply on the VPU
    # and cast to the output dtype in-kernel.
    o_ref[...] = (x_ref[...] * s_ref[0]).astype(o_ref.dtype)


# ----------------------------- helpers --------------------------------------


def _pick_lane(total):
    """Widest lane-dense (multiple-of-128) last dim dividing `total`,
    preferring shapes with at least 8 rows (full sublane utilization)."""
    divisors = [c for c in (4096, 2048, 1024, 512, 256, _LANES) if total % c == 0]
    if not divisors:
        return None
    for c in divisors:
        if total // c >= _SUBLANES:
            return c
    return divisors[-1]


def _choose_vector_lane(total, d):
    """Lane width that is a multiple of both 128 and the vector length d."""
    cands = [c for c in (4096, 2048, 1024, 512, 256, _LANES)
             if total % c == 0 and c % d == 0]
    if not cands and d % _LANES == 0 and d <= 16384 and total % d == 0:
        cands = [d]
    if not cands:
        return None
    for c in cands:
        if total // c >= _SUBLANES:
            return c
    return cands[-1]


def _tile_rows(rows, lane, dtypes, max_tile_bytes):
    """Row-tile size: dtype-aware sublane rounding, VMEM budget, >=4 steps."""
    sizes = [jnp.dtype(d).itemsize for d in dtypes]
    # Sub-32-bit dtypes pack along sublanes (bf16 vreg = 16x128, int8 = 32x128).
    sub = _SUBLANES * max(1, 4 // min(sizes))
    per_row_bytes = lane * max(sizes)
    budget = max(sub, (max_tile_bytes // per_row_bytes) // sub * sub)
    # Prefer >= _MIN_GRID_STEPS steps so a v7x megacore can split the grid.
    target = max(sub, (pl.cdiv(rows, _MIN_GRID_STEPS) // sub) * sub)
    return int(min(rows, budget, target))


def _grid_params():
    return pltpu.CompilerParams(
        dimension_semantics=("parallel",),
        vmem_limit_bytes=_VMEM_LIMIT_BYTES)


def _as_trailing_vector(v, out_shape):
    """Return v as a (D,) vector if it broadcasts only along the last axis."""
    if v.ndim == 0 or not out_shape:
        return None
    if v.shape[-1] != out_shape[-1] or v.shape[-1] <= 1:
        return None
    if any(d != 1 for d in v.shape[:-1]):
        return None
    return v.reshape(v.shape[-1])


# ----------------------------- dense path ------------------------------------


def _mul_tiled_2d(x2, y2, out_dtype, max_tile_bytes):
    rows, lane = x2.shape
    tr = _tile_rows(rows, lane, (x2.dtype, y2.dtype, out_dtype), max_tile_bytes)
    grid = (pl.cdiv(rows, tr),)
    return pl.pallas_call(
        _mul_kernel,
        out_shape=jax.ShapeDtypeStruct((rows, lane), out_dtype),
        grid=grid,
        in_specs=[pl.BlockSpec((tr, lane), lambda i: (i, 0)),
                  pl.BlockSpec((tr, lane), lambda i: (i, 0))],
        out_specs=pl.BlockSpec((tr, lane), lambda i: (i, 0)),
        compiler_params=_grid_params(),
    )(x2, y2)


def _mul_dense(x, y, out_dtype, max_tile_bytes, single_block_bytes):
    """x * y with x.shape == y.shape (native dtypes; promotion in-kernel)."""
    shape = x.shape
    total = x.size
    itemsize = max(x.dtype.itemsize, y.dtype.itemsize, jnp.dtype(out_dtype).itemsize)
    lane = _pick_lane(total)

    # Small: one full-array block, no grid; free reshape to a lane-dense slab.
    if total * itemsize <= single_block_bytes:
        if lane is not None:
            xs, ys = x.reshape(total // lane, lane), y.reshape(total // lane, lane)
        elif x.ndim >= 2:
            xs, ys = x, y
        else:
            xs, ys = x.reshape(1, total), y.reshape(1, total)
        out = pl.pallas_call(
            _mul_kernel,
            out_shape=jax.ShapeDtypeStruct(xs.shape, out_dtype),
        )(xs, ys)
        return out.reshape(shape)

    x_flat = x.reshape(-1)
    y_flat = y.reshape(-1)

    if lane is None:
        # Ragged element count: lane-aligned bulk through the tiled kernel,
        # the (< lane) tail through a tiny single-block call.
        # TODO(synk): masking the final block's store in-kernel would also
        # remove these slice/concatenate copies.
        lane = 1024
        bulk = (total // lane) * lane
        out_bulk = _mul_tiled_2d(x_flat[:bulk].reshape(bulk // lane, lane),
                                 y_flat[:bulk].reshape(bulk // lane, lane),
                                 out_dtype, max_tile_bytes).reshape(-1)
        out_tail = pl.pallas_call(
            _mul_kernel,
            out_shape=jax.ShapeDtypeStruct((1, total - bulk), out_dtype),
        )(x_flat[bulk:].reshape(1, -1), y_flat[bulk:].reshape(1, -1))
        return jnp.concatenate([out_bulk, out_tail.reshape(-1)]).reshape(shape)

    rows = total // lane
    out = _mul_tiled_2d(x_flat.reshape(rows, lane), y_flat.reshape(rows, lane),
                        out_dtype, max_tile_bytes)
    return out.reshape(shape)


# ------------------------- trailing-vector path -------------------------------


def _mul_vector(x, v, out_dtype, max_tile_bytes, single_block_bytes):
    """x (full out shape, last dim D) * v (D,), v resident in VMEM as (1, lane)."""
    shape = x.shape
    total = x.size
    d = v.shape[0]
    itemsize = max(x.dtype.itemsize, v.dtype.itemsize, jnp.dtype(out_dtype).itemsize)

    lane = _choose_vector_lane(total, d)
    if lane is None:
        return None  # caller falls back to the materialized-broadcast path

    rows = total // lane
    x2 = x.reshape(rows, lane)
    v_row = jnp.tile(v, lane // d).reshape(1, lane)  # tiny (<= a few KiB)

    if total * itemsize <= single_block_bytes:
        out = pl.pallas_call(
            _mul_vec_kernel,
            out_shape=jax.ShapeDtypeStruct((rows, lane), out_dtype),
        )(x2, v_row)
        return out.reshape(shape)

    tr = _tile_rows(rows, lane, (x2.dtype, v_row.dtype, out_dtype), max_tile_bytes)
    grid = (pl.cdiv(rows, tr),)
    out = pl.pallas_call(
        _mul_vec_kernel,
        out_shape=jax.ShapeDtypeStruct((rows, lane), out_dtype),
        grid=grid,
        in_specs=[pl.BlockSpec((tr, lane), lambda i: (i, 0)),
                  pl.BlockSpec((1, lane), lambda i: (0, 0))],   # VMEM-resident row
        out_specs=pl.BlockSpec((tr, lane), lambda i: (i, 0)),
        compiler_params=_grid_params(),
    )(x2, v_row)
    return out.reshape(shape)


# ----------------------------- scalar path ------------------------------------


def _mul_scalar_tiled_2d(x2, s_smem, out_dtype, max_tile_bytes):
    rows, lane = x2.shape
    tr = _tile_rows(rows, lane, (x2.dtype, out_dtype), max_tile_bytes)
    grid = (pl.cdiv(rows, tr),)
    return pl.pallas_call(
        _mul_scalar_kernel,
        out_shape=jax.ShapeDtypeStruct((rows, lane), out_dtype),
        grid=grid,
        in_specs=[_SMEM_SPEC, pl.BlockSpec((tr, lane), lambda i: (i, 0))],
        out_specs=pl.BlockSpec((tr, lane), lambda i: (i, 0)),
        compiler_params=_grid_params(),
    )(s_smem, x2)


def _mul_scalar(x, s, out_dtype, max_tile_bytes, single_block_bytes):
    """x * scalar s; s stays a 32-bit SMEM scalar (cast happens in-kernel)."""
    shape = x.shape
    total = x.size
    itemsize = max(x.dtype.itemsize, jnp.dtype(out_dtype).itemsize)

    if jnp.issubdtype(out_dtype, jnp.floating):
        s_smem = jnp.asarray(s).astype(jnp.float32).reshape(1)
    elif jnp.issubdtype(out_dtype, jnp.integer) or out_dtype == jnp.bool_:
        s_smem = jnp.asarray(s).astype(jnp.int32).reshape(1)
    else:
        # Exotic dtype: fall back to the dense path.
        return _mul_dense(x, jnp.broadcast_to(jnp.asarray(s).reshape(()), shape),
                          out_dtype, max_tile_bytes, single_block_bytes)

    lane = _pick_lane(total)

    if total * itemsize <= single_block_bytes:
        if lane is not None:
            xs = x.reshape(total // lane, lane)
        elif x.ndim >= 2:
            xs = x
        else:
            xs = x.reshape(1, total)
        out = pl.pallas_call(
            _mul_scalar_kernel,
            out_shape=jax.ShapeDtypeStruct(xs.shape, out_dtype),
            in_specs=[_SMEM_SPEC, _VMEM_SPEC],
            out_specs=_VMEM_SPEC,
        )(s_smem, xs)
        return out.reshape(shape)

    x_flat = x.reshape(-1)

    if lane is None:
        # TODO(synk): mask the final block's store instead of the bulk/tail split.
        lane = 1024
        bulk = (total // lane) * lane
        out_bulk = _mul_scalar_tiled_2d(x_flat[:bulk].reshape(bulk // lane, lane),
                                        s_smem, out_dtype, max_tile_bytes).reshape(-1)
        out_tail = pl.pallas_call(
            _mul_scalar_kernel,
            out_shape=jax.ShapeDtypeStruct((1, total - bulk), out_dtype),
            in_specs=[_SMEM_SPEC, _VMEM_SPEC],
            out_specs=_VMEM_SPEC,
        )(s_smem, x_flat[bulk:].reshape(1, -1))
        return jnp.concatenate([out_bulk, out_tail.reshape(-1)]).reshape(shape)

    rows = total // lane
    out = _mul_scalar_tiled_2d(x_flat.reshape(rows, lane), s_smem, out_dtype,
                               max_tile_bytes)
    return out.reshape(shape)


# ----------------------------- public API ------------------------------------


def pallas_mul(a, b, *, max_tile_bytes=_DEFAULT_MAX_TILE_BYTES,
               single_block_bytes=_DEFAULT_SINGLE_BLOCK_BYTES):
    """Elementwise multiply with torch.mul-style broadcasting."""
    a = jnp.asarray(a)
    b = jnp.asarray(b)
    out_dtype = jnp.result_type(a.dtype, b.dtype)
    out_shape = jnp.broadcast_shapes(a.shape, b.shape)

    if not out_shape:  # 0-d output: run through a (1, 1) block.
        out = _mul_dense(a.reshape(1, 1), b.reshape(1, 1), out_dtype,
                         max_tile_bytes, single_block_bytes)
        return out.reshape(())

    # Scalar operand: keep it in SMEM, broadcast on the VPU.
    if b.size == 1 and a.shape == out_shape:
        return _mul_scalar(a, b, out_dtype, max_tile_bytes, single_block_bytes)
    if a.size == 1 and b.shape == out_shape:
        return _mul_scalar(b, a, out_dtype, max_tile_bytes, single_block_bytes)

    # Trailing-dim vector operand (e.g. per-feature `val`): broadcast-aware
    # BlockSpec keeps it resident in VMEM as one (1, lane) row.
    if a.shape == out_shape:
        v = _as_trailing_vector(b, out_shape)
        if v is not None:
            r = _mul_vector(a, v, out_dtype, max_tile_bytes, single_block_bytes)
            if r is not None:
                return r
    if b.shape == out_shape:
        v = _as_trailing_vector(a, out_shape)
        if v is not None:
            r = _mul_vector(b, v, out_dtype, max_tile_bytes, single_block_bytes)
            if r is not None:
                return r

    if a.shape == b.shape == out_shape:
        return _mul_dense(a, b, out_dtype, max_tile_bytes, single_block_bytes)

    # General broadcasting fallback: materialize both operands (native dtype).
    # TODO(synk): a fully broadcast-aware BlockSpec (pinning arbitrary
    # broadcast axes to block 0) would avoid this extra HBM pass.
    xb = jnp.broadcast_to(a, out_shape)
    yb = jnp.broadcast_to(b, out_shape)
    return _mul_dense(xb, yb, out_dtype, max_tile_bytes, single_block_bytes)


class Mul:
    """Pallas mirror of hummingbird's Mul(PhysicalOperator, nn.Module)."""

    def __init__(self, val=None):
        self.val = None if val is None else jnp.asarray(val, dtype=jnp.float32)

    def __call__(self, *x):
        if len(x) == 1:
            assert self.val is not None, "Mul.val must be set for single-input call"
            return pallas_mul(x[0], self.val)
        return pallas_mul(*x)


if __name__ == "__main__":
    key = jax.random.PRNGKey(0)
    k1, k2, k3, k4 = jax.random.split(key, 4)

    x = jax.random.normal(k1, (2, 4, 16, 16), dtype=jnp.float32)
    x2 = jax.random.normal(k2, (2, 4, 16, 16), dtype=jnp.float32)

    # 1) single input * scalar parameter `val` (common hummingbird case).
    y1 = Mul(val=[2.5])(x)
    jax.block_until_ready(y1)
    assert y1.shape == x.shape and y1.dtype == jnp.float32
    assert jnp.allclose(y1, x * 2.5, rtol=1e-6, atol=1e-6)

    # 2) two-input elementwise multiply (lane-dense single-block path).
    y2 = Mul()(x, x2)
    jax.block_until_ready(y2)
    assert jnp.allclose(y2, x * x2, rtol=1e-6, atol=1e-6)

    # 3) per-feature `val` broadcast over the trailing dim (VMEM-resident row).
    val_vec = jnp.linspace(0.5, 2.0, 16, dtype=jnp.float32)
    y3 = Mul(val=val_vec)(x)
    jax.block_until_ready(y3)
    assert jnp.allclose(y3, x * val_vec, rtol=1e-6, atol=1e-6)

    # 4) bf16 input * f32 val: dtype promotion happens in-kernel.
    y4 = Mul(val=[2.5])(x.astype(jnp.bfloat16))
    jax.block_until_ready(y4)
    assert y4.dtype == jnp.float32
    assert jnp.allclose(y4, x.astype(jnp.bfloat16).astype(jnp.float32) * 2.5,
                        rtol=1e-6, atol=1e-6)

    # 5) exercise the tiled (multi-step grid) paths with artificially small
    #    thresholds at modest shapes.
    xl = jax.random.normal(k3, (8, 8, 32, 32), dtype=jnp.float32)
    xl2 = jax.random.normal(k4, (8, 8, 32, 32), dtype=jnp.float32)
    kw = dict(max_tile_bytes=64 * 1024, single_block_bytes=64 * 1024)
    y5 = pallas_mul(xl, xl2, **kw)
    y6 = pallas_mul(xl, jnp.asarray([3.0], jnp.float32), **kw)
    val32 = jnp.linspace(-1.0, 1.0, 32, dtype=jnp.float32)
    y7 = pallas_mul(xl, val32, **kw)
    jax.block_until_ready((y5, y6, y7))
    assert jnp.allclose(y5, xl * xl2, rtol=1e-6, atol=1e-6)
    assert jnp.allclose(y6, xl * 3.0, rtol=1e-6, atol=1e-6)
    assert jnp.allclose(y7, xl * val32, rtol=1e-6, atol=1e-6)

    # 6) ragged element count and general-broadcast fallback.
    xr = jax.random.normal(k1, (3, 5, 7), dtype=jnp.float32)
    y8 = pallas_mul(xr, xr)
    y9 = pallas_mul(xr, jnp.asarray([0.5], jnp.float32))
    ya = pallas_mul(x, jnp.full((4, 1, 16), 1.5, dtype=jnp.float32))
    jax.block_until_ready((y8, y9, ya))
    assert jnp.allclose(y8, xr * xr, rtol=1e-6, atol=1e-6)
    assert jnp.allclose(y9, xr * 0.5, rtol=1e-6, atol=1e-6)
    assert jnp.allclose(ya, x * 1.5, rtol=1e-6, atol=1e-6)

    print("KERNEL_OK")
</pallas_src>

<mosaic_0001>
module attributes {stable_mosaic.version = 11 : i64} {
  func.func @_mul_scalar_kernel(%arg0: memref<1xf32, #tpu.memory_space<smem>>, %arg1: memref<8x256xf32, #tpu.memory_space<vmem>>, %arg2: memref<8x256xf32, #tpu.memory_space<vmem>>) attributes {dimension_semantics = [], scalar_prefetch = 0 : i64, scratch_operands = 0 : i64, tpu.core_type = #tpu.core_type<tc>} {
    %c0 = arith.constant 0 : index
    %c0_0 = arith.constant 0 : index
    %0 = vector.load %arg1[%c0, %c0_0] : memref<8x256xf32, #tpu.memory_space<vmem>>, vector<8x256xf32>
    %c0_1 = arith.constant 0 : index
    %1 = memref.load %arg0[%c0_1] : memref<1xf32, #tpu.memory_space<smem>>
    %2 = vector.broadcast %1 : f32 to vector<8x256xf32>
    %3 = arith.mulf %0, %2 : vector<8x256xf32>
    %c0_2 = arith.constant 0 : index
    %c0_3 = arith.constant 0 : index
    %4 = vector.load %arg2[%c0_2, %c0_3] : memref<8x256xf32, #tpu.memory_space<vmem>>, vector<8x256xf32>
    tpu.vector_store %arg2[%c0_2, %c0_3], %3 {strides = array<i32>} : memref<8x256xf32, #tpu.memory_space<vmem>>, vector<8x256xf32>,
    return
  }
}

</mosaic_0001>

<llo_original>
// kernel: tpu_custom_call.1
$region0: #{tpu_custom_call.1}
  #allocation0 [shape = 'u32[]', space=smem, size = 0x4, offset = 0x4, fixed_abs, tag = 'smem constant byte address 0x4 - core index']
  #allocation1 [shape = 'u32[144,128]{1,0:T(1,128)}', space=vmem, size = 0x12000, scoped, tag = 'internal scratch']
  #allocation2 [shape = 'f32[1]{0:T(128)S(6)}', space=smem, size = 0x200, scoped, tag = 'scoped memory for tpu_custom_call.1']
  %s0 = inlined_call_operand.<no memory space> [shape: f32[1], index: 0, kind: input, shape index: {}]
  %s1 = inlined_call_operand.hbm [shape: f32[8,256], index: 1, kind: input, shape index: {}]
  %s2 = inlined_call_operand.hbm [shape: f32[8,256], index: 2, kind: output, shape index: {}]
  %s3 = sld [smem:[#allocation0]]
  $region22: #{tpu_custom_call.1} parent=0
    _
  %s5 = ssub.s32 1, %s3
  %s6 = scalar_select 0, %s5, %s3
  %7 = sst [smem:[#allocation2]] %s0
  $region1: #{tpu_custom_call.1} parent=0
    #allocation3 [shape = 'u8[8192]{0}', space=vmem, size = 0x2000, scoped, tag = 'input window, operand 1, single buffered']
    #allocation4 [shape = 's32[1]{0}', space=sflag, size = 0x4, scoped, tag = 'scoped memory for tpu_custom_call.1']
    #allocation5 [shape = 's32[1]{0}', space=sflag, size = 0x4, scoped, tag = 'scoped memory for tpu_custom_call.1']
    #allocation6 [shape = 'u8[8192]{0}', space=vmem, size = 0x2000, scoped, tag = 'output window, operand 0, single buffered']
    %8 = vsyncpa [#allocation4], 0
    %9 = vsyncpa [#allocation5], 0
    // Predicated region
    $region2: #{tpu_custom_call.1} parent=1 // pred_check
      _
    $region3: #{tpu_custom_call.1} parent=1 // pred_check_branch
      %11 = sbr.rel (0) target = $region5
    $region4: #{tpu_custom_call.1} parent=1 // pred_region
      _
    $region5: #{tpu_custom_call.1} parent=1 // pred_fallthru
      _
    // Predicated region
    $region6: #{tpu_custom_call.1} parent=1 // pred_check
      _
    $region7: #{tpu_custom_call.1} parent=1 // pred_check_branch
      %13 = sbr.rel (0) target = $region9
    $region8: #{tpu_custom_call.1} parent=1 // pred_region
      %s15 = ssub.s32 256, 256
      %16 = vsyncadd [#allocation4], %s15
      %s18 = sshll.u32 [#allocation3], 4
      %s19 = int_to_ptr.vmem [resolvable:$true] %s18
      %21 = dma.hbm_to_vmem [thread:$0]  %s1, 256, %s19, [#allocation4]
    $region9: #{tpu_custom_call.1} parent=1 // pred_fallthru
      _
    // Predicated region
    $region10: #{tpu_custom_call.1} parent=1 // pred_check
      _
    $region11: #{tpu_custom_call.1} parent=1 // pred_check_branch
      %23 = sbr.rel (0) target = $region13
    $region12: #{tpu_custom_call.1} parent=1 // pred_region
      %24 = dma.done [#allocation4], 256
    $region13: #{tpu_custom_call.1} parent=1 // pred_fallthru
      _
    %v25 = vld [vmem:[#allocation3] sm:$0xff]
    %v26 = vld [vmem:[#allocation3 + $0x8] sm:$0xff]
    %s27 = sld [smem:[#allocation2]]
    %v28 = vstv %s27
    %v29 = vmul.f32 %v25, %v28
    %v30 = vmul.f32 %v26, %v28
    %31 = vst [vmem:[#allocation6] sm:$0xff] %v29
    %32 = vst [vmem:[#allocation6 + $0x8] sm:$0xff] %v30
    // Predicated region
    $region14: #{tpu_custom_call.1} parent=1 // pred_check
      _
    $region15: #{tpu_custom_call.1} parent=1 // pred_check_branch
      %34 = sbr.rel (0) target = $region17
    $region16: #{tpu_custom_call.1} parent=1 // pred_region
      %s36 = ssub.s32 256, 256
      %37 = vsyncadd [#allocation5], %s36
      %s39 = sshll.u32 [#allocation6], 4
      %s40 = int_to_ptr.vmem [resolvable:$true] %s39
      %42 = dma.vmem_to_hbm [thread:$0]  %s40, 256, %s2, [#allocation5]
    $region17: #{tpu_custom_call.1} parent=1 // pred_fallthru
      _
    // Predicated region
    $region18: #{tpu_custom_call.1} parent=1 // pred_check
      _
    $region19: #{tpu_custom_call.1} parent=1 // pred_check_branch
      %44 = sbr.rel (0) target = $region21
    $region20: #{tpu_custom_call.1} parent=1 // pred_region
      %45 = dma.done [#allocation5], 256
    $region21: #{tpu_custom_call.1} parent=1 // pred_fallthru
      _
    %46 = vsyncpa [#allocation4], 1
    %47 = vsyncpa [#allocation5], 1

</llo_original>
